<compile_context>
chip_gen: v7x
topology: tpu7x:2x2x1
jax: 0.10.0
libtpu: 0.0.40
codegen_flags: <defaults>
</compile_context>

<pallas_src>
import functools

import jax
import jax.numpy as jnp
from jax.experimental import pallas as pl
from jax.experimental.pallas import tpu as pltpu


# Clamp on |f1|, |f2| before exponentiating so the individual factors stay
# finite in f32 even when only their product matters.
_FACTOR_CLAMP = 80.0


def _round_up(x, m):
    return (x + m - 1) // m * m


def _largest_divisor_tile(np_, cap):
    for t in (1024, 512, 256, 128, 64, 32, 16, 8):
        if t <= cap and np_ % t == 0:
            return t
    return np_


def _pick_tiles(n):
    """(padded_n, tm, tk); tm,tk divide padded_n; >=2 row tiles for v7x dual-TC."""
    np_ = _round_up(max(n, 8), 128)
    tk = _largest_divisor_tile(np_, 1024)
    tm = _largest_divisor_tile(np_, 1024)
    if np_ // tm < 2:          # keep the "parallel" row axis shardable over 2 TCs
        tm = max(tm // 2, 8)
    return np_, tm, tk


# ---------------------------------------------------------------------------
# Prologue: h = X @ W (bf16, lane-padded) and the four per-node exp factors
#   fac = [exp(-f1), exp(-f2), exp(-alpha*f1), exp(-alpha*f2)]   (f32, clamped)
# produced by a single tiny MXU matmul h @ amat, amat = [a1|a2|alpha*a1|alpha*a2].
# ---------------------------------------------------------------------------
def _prologue_kernel(x_ref, w_ref, amat_ref, h_ref, fac_ref, *, alpha, clamp):
    h = jnp.dot(x_ref[...], w_ref[...], preferred_element_type=jnp.float32)   # [TM, Fp]
    # f4 columns: [f1, f2, alpha*f1, alpha*f2]
    f4 = jnp.dot(h, amat_ref[...], preferred_element_type=jnp.float32)        # [TM, 4]
    col = jax.lax.broadcasted_iota(jnp.int32, f4.shape, 1)
    bound = jnp.where(col < 2, clamp, alpha * clamp)
    f4 = jnp.clip(f4, -bound, bound)
    fac_ref[...] = jnp.exp(-f4)            # columns: [p1, p2, q1, q2]
    h_ref[...] = h.astype(h_ref.dtype)


def _prologue_call(xp, wp, amat, *, np_, tm, fp, fin, alpha):
    kernel = functools.partial(_prologue_kernel, alpha=alpha, clamp=_FACTOR_CLAMP)
    return pl.pallas_call(
        kernel,
        out_shape=(jax.ShapeDtypeStruct((np_, fp), jnp.bfloat16),
                   jax.ShapeDtypeStruct((np_, 4), jnp.float32)),
        grid_spec=pltpu.PrefetchScalarGridSpec(
            num_scalar_prefetch=0,
            grid=(np_ // tm,),
            in_specs=[pl.BlockSpec((tm, fin), lambda i: (i, 0)),
                      pl.BlockSpec((fin, fp), lambda i: (0, 0)),
                      pl.BlockSpec((fp, 4), lambda i: (0, 0))],
            out_specs=[pl.BlockSpec((tm, fp), lambda i: (i, 0)),
                       pl.BlockSpec((tm, 4), lambda i: (i, 0))]),
        compiler_params=pltpu.CompilerParams(
            dimension_semantics=("parallel",)),
    )(xp, wp, amat)


# ---------------------------------------------------------------------------
# Main attention kernel: masked factored-exp scores, accumulate s @ h directly
# into out_ref over column tiles; f32 rowsum scratch; normalize + ELU epilogue.
# ---------------------------------------------------------------------------
def _attn_kernel(p1_ref, q1_ref, p2_ref, q2_ref, adj_ref, h_ref, out_ref, rs_ref,
                 *, tk, h_resident):
    k = pl.program_id(1)

    @pl.when(k == 0)
    def _():
        out_ref[...] = jnp.zeros_like(out_ref)
        rs_ref[...] = jnp.zeros_like(rs_ref)

    off = pl.multiple_of(k * tk, tk)
    p2 = p2_ref[:, pl.ds(off, tk)]                          # [1, TK]  (VMEM-resident)
    q2 = q2_ref[:, pl.ds(off, tk)]
    # exp(-leakyrelu(f1_i + f2_j)) == min(p1*p2, q1*q2) for 0 <= alpha <= 1:
    # two VPU multiplies + a min instead of an O(N^2) EUP exp.
    scores = jnp.minimum(p1_ref[...] * p2, q1_ref[...] * q2)      # [TM, TK] f32
    s = jnp.where(adj_ref[...] != 0, scores, 0.0)

    # f32 rowsum via XLU reduce (idle slot under an MXU-bound loop).
    rs_ref[...] += jnp.sum(s, axis=-1, keepdims=True)

    h_tile = h_ref[pl.ds(off, tk), :] if h_resident else h_ref[...]
    out_ref[...] += jnp.dot(s.astype(jnp.bfloat16), h_tile,
                            preferred_element_type=jnp.float32)

    @pl.when(k == pl.num_programs(1) - 1)
    def _():
        rs = rs_ref[...]
        inv = pl.reciprocal(jnp.where(rs > 0.0, rs, 1.0), approx=True)
        hp = out_ref[...] * inv
        out_ref[...] = jnp.where(hp > 0.0, hp, jnp.exp(hp) - 1.0)   # ELU


def _attention_call(p1, q1, p2, q2, adj_i8, h, *, np_, tm, tk, fp):
    # Keep h fully VMEM-resident across the grid when it fits (<= 8 MiB bf16);
    # then the only O(N^2) HBM traffic is the int8 adjacency.
    h_resident = np_ * fp * 2 <= 8 * 1024 * 1024
    kernel = functools.partial(_attn_kernel, tk=tk, h_resident=h_resident)

    h_spec = (pl.BlockSpec((np_, fp), lambda i, k: (0, 0)) if h_resident
              else pl.BlockSpec((tk, fp), lambda i, k: (k, 0)))

    # VMEM budget (conservative: count double-buffering even for resident blocks).
    h_bytes = (2 * np_ * fp * 2) if h_resident else (2 * tk * fp * 2)
    tile_bytes = (2 * tm * tk              # adj tiles (int8, double-buffered)
                  + h_bytes                # h (bf16)
                  + 2 * tm * fp * 4        # out tile (f32, accumulator)
                  + 2 * 2 * tm * 4         # p1 / q1 tiles
                  + 2 * 2 * np_ * 4        # resident p2 / q2
                  + tm * 4)                # rowsum scratch
    try:
        phys = int(pltpu.get_tpu_info().vmem_capacity_bytes)
    except Exception:
        phys = 64 * 1024 * 1024            # conservative default (v7x per-core VMEM)
    vmem_limit = min(phys * 3 // 4, max(2 * tile_bytes, 16 * 1024 * 1024))
    vmem_limit = int(max(vmem_limit, tile_bytes + (2 << 20)))

    cost = pl.CostEstimate(
        flops=2 * np_ * np_ * fp + 2 * np_ * np_,        # s@h + rowsum
        transcendentals=np_ * fp,                        # ELU epilogue
        bytes_accessed=(np_ * np_                        # adj (int8)
                        + np_ * fp * 2                   # h (read once, resident)
                        + np_ * fp * 4                   # out
                        + 4 * np_ * 4))                  # per-node factors

    return pl.pallas_call(
        kernel,
        out_shape=jax.ShapeDtypeStruct((np_, fp), jnp.float32),
        grid_spec=pltpu.PrefetchScalarGridSpec(
            num_scalar_prefetch=0,
            grid=(np_ // tm, np_ // tk),                 # reduction axis last
            in_specs=[pl.BlockSpec((tm, 1), lambda i, k: (i, 0)),    # p1
                      pl.BlockSpec((tm, 1), lambda i, k: (i, 0)),    # q1
                      pl.BlockSpec((1, np_), lambda i, k: (0, 0)),   # p2 (resident)
                      pl.BlockSpec((1, np_), lambda i, k: (0, 0)),   # q2 (resident)
                      pl.BlockSpec((tm, tk), lambda i, k: (i, k)),   # adj (int8)
                      h_spec],                                       # h (bf16)
            out_specs=pl.BlockSpec((tm, fp), lambda i, k: (i, 0)),
            scratch_shapes=[pltpu.VMEM((tm, 1), jnp.float32)]),      # rowsum
        compiler_params=pltpu.CompilerParams(
            dimension_semantics=("parallel", "arbitrary"),
            vmem_limit_bytes=vmem_limit),
        cost_estimate=cost,
    )(p1, q1, p2, q2, adj_i8, h)


# ---------------------------------------------------------------------------
# Wrapper: padding / dtype staging around the two kernels.
# ---------------------------------------------------------------------------
def preprocess_adjacency(adj, n_padded=None):
    """One-time conversion of a dense adjacency into the padded int8 mask the
    kernel consumes.  Callers should cache/reuse the result across calls so the
    f32->int8 conversion (O(N^2) HBM traffic) is not paid every forward."""
    n = adj.shape[0]
    if n_padded is None:
        n_padded, _, _ = _pick_tiles(n)
    mask = (adj != 0).astype(jnp.int8)
    if n_padded != n:
        mask = jnp.zeros((n_padded, n_padded), jnp.int8).at[:n, :n].set(mask)
    return mask


def sp_graph_attention_layer(x, w, a, adj=None, *, alpha=0.2, adj_i8=None):
    """Forward of SpGraphAttentionLayer (concat=True, eval-mode dropout)."""
    n, fin = x.shape
    fout = w.shape[1]
    assert a.shape == (1, 2 * fout)
    # Factored-exp trick requires the leaky-relu negative slope in [0, 1].
    assert 0.0 <= alpha <= 1.0

    fp = _round_up(fout, 128)            # lane-dense feature dim (no ones column)
    np_, tm, tk = _pick_tiles(n)

    if adj_i8 is None:
        assert adj is not None
        adj_i8 = preprocess_adjacency(adj, np_)
    assert adj_i8.shape == (np_, np_) and adj_i8.dtype == jnp.int8

    # Pad node/feature dims; bake alpha into amat so one prologue MXU matmul
    # yields [f1, f2, alpha*f1, alpha*f2] per node.
    xp = jnp.zeros((np_, fin), jnp.float32).at[:n, :].set(x.astype(jnp.float32))
    wp = jnp.zeros((fin, fp), jnp.float32).at[:, :fout].set(w.astype(jnp.float32))
    a1 = a[0, :fout].astype(jnp.float32)
    a2 = a[0, fout:].astype(jnp.float32)
    amat = (jnp.zeros((fp, 4), jnp.float32)
            .at[:fout, 0].set(a1).at[:fout, 1].set(a2)
            .at[:fout, 2].set(alpha * a1).at[:fout, 3].set(alpha * a2))

    # Prologue: h (bf16, lane-padded) + per-node exp factors [p1, p2, q1, q2].
    h, fac = _prologue_call(xp, wp, amat, np_=np_, tm=tm, fp=fp, fin=fin, alpha=alpha)
    p1 = fac[:, 0:1]                     # [Np, 1]  exp(-f1)
    q1 = fac[:, 2:3]                     # [Np, 1]  exp(-alpha*f1)
    p2 = fac[:, 1].reshape(1, np_)       # [1, Np]  exp(-f2)
    q2 = fac[:, 3].reshape(1, np_)       # [1, Np]  exp(-alpha*f2)

    out_p = _attention_call(p1, q1, p2, q2, adj_i8, h,
                            np_=np_, tm=tm, tk=tk, fp=fp)
    return out_p[:n, :fout]


# ---------------------------------------------------------------------------
# Reference + test
# ---------------------------------------------------------------------------
def _xavier_normal(key, shape, gain):
    fan_in, fan_out = shape[0], shape[1]
    std = gain * jnp.sqrt(2.0 / (fan_in + fan_out))
    return std * jax.random.normal(key, shape, dtype=jnp.float32)


def _reference(x, w, a, adj, alpha):
    h = x @ w
    fout = w.shape[1]
    f1 = h @ a[0, :fout]
    f2 = h @ a[0, fout:]
    e = f1[:, None] + f2[None, :]
    lrelu = jnp.where(e > 0, e, alpha * e)
    s = jnp.exp(-lrelu) * (adj != 0).astype(jnp.float32)
    rowsum = jnp.sum(s, axis=1, keepdims=True)
    hp = (s @ h) / rowsum
    return jnp.where(hp > 0, hp, jnp.exp(hp) - 1.0)


if __name__ == "__main__":
    N, FIN, FOUT = 64, 16, 32
    ALPHA = 0.2  # leaky-relu negative slope

    key = jax.random.PRNGKey(0)
    k_x, k_w, k_a, k_adj = jax.random.split(key, 4)

    x = jax.random.normal(k_x, (N, FIN), dtype=jnp.float32)
    W = _xavier_normal(k_w, (FIN, FOUT), gain=1.414)
    a = _xavier_normal(k_a, (1, 2 * FOUT), gain=1.414)
    # random sparse adjacency + self loops (every row has at least one edge)
    adj = (jax.random.uniform(k_adj, (N, N)) < 0.15).astype(jnp.float32)
    adj = jnp.maximum(adj, jnp.eye(N, dtype=jnp.float32))

    # Preprocess the adjacency once (cacheable across forward calls).
    adj_i8 = preprocess_adjacency(adj)

    out = jax.block_until_ready(
        sp_graph_attention_layer(x, W, a, alpha=ALPHA, adj_i8=adj_i8))
    ref = _reference(x, W, a, adj, ALPHA)

    assert out.shape == (N, FOUT)
    assert bool(jnp.all(jnp.isfinite(out)))
    # bf16 MXU operands + approx reciprocal -> slightly looser tolerance than f32
    assert jnp.allclose(out, ref, atol=2e-2, rtol=2e-2), float(jnp.max(jnp.abs(out - ref)))

    print("KERNEL_OK")
</pallas_src>

<mosaic_0001>
module attributes {stable_mosaic.version = 11 : i64} {
  func.func @_prologue_kernel(%arg0: i32, %arg1: memref<64x16xf32, #tpu.memory_space<vmem>>, %arg2: memref<16x128xf32, #tpu.memory_space<vmem>>, %arg3: memref<128x4xf32, #tpu.memory_space<vmem>>, %arg4: memref<64x128xbf16, #tpu.memory_space<vmem>>, %arg5: memref<64x4xf32, #tpu.memory_space<vmem>>) attributes {dimension_semantics = [#tpu.dimension_semantics<parallel>], iteration_bounds = array<i64: 2>, scalar_prefetch = 0 : i64, scratch_operands = 0 : i64, tpu.core_type = #tpu.core_type<tc>, window_params = [{transform_indices = @transform_0, window_bounds = array<i64: 64, 16>}, {pipeline_mode = #tpu.pipeline_mode<synchronous>, transform_indices = @transform_1, window_bounds = array<i64: 16, 128>}, {pipeline_mode = #tpu.pipeline_mode<synchronous>, transform_indices = @transform_2, window_bounds = array<i64: 128, 4>}, {transform_indices = @transform_3, window_bounds = array<i64: 64, 128>}, {transform_indices = @transform_4, window_bounds = array<i64: 64, 4>}]} {
    %c0 = arith.constant 0 : index
    %c0_0 = arith.constant 0 : index
    %0 = vector.load %arg1[%c0, %c0_0] : memref<64x16xf32, #tpu.memory_space<vmem>>, vector<64x16xf32>
    %c0_1 = arith.constant 0 : index
    %c0_2 = arith.constant 0 : index
    %1 = vector.load %arg2[%c0_1, %c0_2] : memref<16x128xf32, #tpu.memory_space<vmem>>, vector<16x128xf32>
    %cst = arith.constant dense<0.000000e+00> : vector<64x128xf32>
    %2 = tpu.matmul %0, %1, %cst {dimension_numbers = #tpu.dot_dimension_numbers<[1], [0], [0], [1], [0, 0, 1, 1], [], []>} : vector<64x16xf32>, vector<16x128xf32>, vector<64x128xf32> -> vector<64x128xf32>
    %c0_3 = arith.constant 0 : index
    %c0_4 = arith.constant 0 : index
    %3 = vector.load %arg3[%c0_3, %c0_4] : memref<128x4xf32, #tpu.memory_space<vmem>>, vector<128x4xf32>
    %cst_5 = arith.constant dense<0.000000e+00> : vector<64x4xf32>
    %4 = tpu.matmul %2, %3, %cst_5 {dimension_numbers = #tpu.dot_dimension_numbers<[1], [0], [0], [1], [0, 0, 1, 1], [], []>} : vector<64x128xf32>, vector<128x4xf32>, vector<64x4xf32> -> vector<64x4xf32>
    %5 = tpu.iota {dimensions = array<i32: 1>} : vector<64x4xi32>
    %c2_i32 = arith.constant 2 : i32
    %6 = vector.broadcast %c2_i32 : i32 to vector<64x4xi32>
    %7 = arith.cmpi slt, %5, %6 : vector<64x4xi32>
    %cst_6 = arith.constant 8.000000e+01 : f32
    %cst_7 = arith.constant 1.600000e+01 : f32
    %8 = vector.broadcast %cst_6 : f32 to vector<64x4xf32>
    %9 = vector.broadcast %cst_7 : f32 to vector<64x4xf32>
    %10 = arith.select %7, %8, %9 : vector<64x4xi1>, vector<64x4xf32>
    %cst_8 = arith.constant 0.000000e+00 : f32
    %11 = vector.broadcast %cst_8 : f32 to vector<64x4xf32>
    %12 = arith.subf %11, %10 : vector<64x4xf32>
    %13 = arith.maximumf %12, %4 : vector<64x4xf32>
    %14 = arith.minimumf %10, %13 : vector<64x4xf32>
    %cst_9 = arith.constant 0.000000e+00 : f32
    %15 = vector.broadcast %cst_9 : f32 to vector<64x4xf32>
    %16 = arith.subf %15, %14 : vector<64x4xf32>
    %17 = math.exp %16 : vector<64x4xf32>
    %c0_10 = arith.constant 0 : index
    %c0_11 = arith.constant 0 : index
    %18 = vector.load %arg5[%c0_10, %c0_11] : memref<64x4xf32, #tpu.memory_space<vmem>>, vector<64x4xf32>
    tpu.vector_store %arg5[%c0_10, %c0_11], %17 {strides = array<i32>} : memref<64x4xf32, #tpu.memory_space<vmem>>, vector<64x4xf32>,
    %19 = arith.truncf %2 : vector<64x128xf32> to vector<64x128xbf16>
    %c0_12 = arith.constant 0 : index
    %c0_13 = arith.constant 0 : index
    %20 = vector.load %arg4[%c0_12, %c0_13] : memref<64x128xbf16, #tpu.memory_space<vmem>>, vector<64x128xbf16>
    tpu.vector_store %arg4[%c0_12, %c0_13], %19 {strides = array<i32>} : memref<64x128xbf16, #tpu.memory_space<vmem>>, vector<64x128xbf16>,
    return
  }
  func.func @transform_0(%arg0: i32) -> (i32, i32) {
    %c0_i32 = arith.constant 0 : i32
    %c0_i32_0 = arith.constant 0 : i32
    return %arg0, %c0_i32 : i32, i32
  }
  func.func @transform_1(%arg0: i32) -> (i32, i32) {
    %c0_i32 = arith.constant 0 : i32
    %c0_i32_0 = arith.constant 0 : i32
    %c0_i32_1 = arith.constant 0 : i32
    return %c0_i32, %c0_i32_0 : i32, i32
  }
  func.func @transform_2(%arg0: i32) -> (i32, i32) {
    %c0_i32 = arith.constant 0 : i32
    %c0_i32_0 = arith.constant 0 : i32
    %c0_i32_1 = arith.constant 0 : i32
    return %c0_i32, %c0_i32_0 : i32, i32
  }
  func.func @transform_3(%arg0: i32) -> (i32, i32) {
    %c0_i32 = arith.constant 0 : i32
    %c0_i32_0 = arith.constant 0 : i32
    return %arg0, %c0_i32 : i32, i32
  }
  func.func @transform_4(%arg0: i32) -> (i32, i32) {
    %c0_i32 = arith.constant 0 : i32
    %c0_i32_0 = arith.constant 0 : i32
    return %arg0, %c0_i32 : i32, i32
  }
}

</mosaic_0001>

<llo_original>
// kernel: tpu_custom_call.1
$region0: #{tpu_custom_call.1}
  #allocation0 [shape = 'u32[]', space=smem, size = 0x4, offset = 0x4, fixed_abs, tag = 'smem constant byte address 0x4 - core index']
  #allocation1 [shape = 'u32[144,128]{1,0:T(1,128)}', space=vmem, size = 0x12000, scoped, tag = 'internal scratch']
  %s0 = inlined_call_operand.vmem [shape: f32[128,16], index: 0, kind: input, shape index: {}]
  %s1 = inlined_call_operand.vmem [shape: f32[16,128], index: 1, kind: input, shape index: {}]
  %s2 = inlined_call_operand.vmem [shape: f32[128,4], index: 2, kind: input, shape index: {}]
  %s3 = inlined_call_operand.hbm [shape: bf16[128,128], index: 3, kind: output, shape index: {0}]
  %s4 = inlined_call_operand.vmem [shape: f32[128,4], index: 4, kind: output, shape index: {1}]
  %5 = xla_tuple %s3, %s4
  %s6 = sld [smem:[#allocation0]]
  $region53: #{tpu_custom_call.1} parent=0
    _
  %s8 = ssub.s32 1, %s6
  %s9 = scalar_select 0, %s8, %s6
  $region1: #{tpu_custom_call.1} parent=0
    #allocation2 [shape = 'u8[32768]{0}', space=vmem, size = 0x8000, scoped, tag = 'output window, operand 0']
    #allocation3 [shape = 's32[2]{0}', space=sflag, size = 0x8, scoped, tag = 'scoped memory for tpu_custom_call.1']
    %10 = vsyncpa [#allocation3], 0
    %s11 = scalar_lea.sflag [#allocation3], 1
    %12 = vsyncpa %s11, 0
    loop: start=0, step=1, limit=4
    $region2: #{tpu_custom_call.1} parent=1 // loop_pre_header
      _
    $region3: #{tpu_custom_call.1} parent=1 // loop_header
      %s14 = sphi 0, %s18
      %p15 = scmp.ge.s32.totalorder %s14, 4
      %s24 = sphi 0, %s26
      %s27 = sphi 0, %s24
      %s28 = sphi 0, %s27
      %s44 = sphi 0, %s28
      %s48 = sphi 0, %s48
      %s50 = sphi 0, %s48
      %s51 = sphi 0, %s50
      %s65 = sphi 0, %s51
      %s69 = sphi 0, %s69
      %s71 = sphi 0, %s69
      %s72 = sphi 0, %s71
      %s86 = sphi 0, %s72
      %s92 = sphi 0, %s94
      %s95 = sphi 0, %s92
      %s96 = sphi 0, %s95
      %s112 = sphi 0, %s96
      %s118 = sphi 0, %s120
      %s121 = sphi 0, %s118
      %s122 = sphi 0, %s121
      %s138 = sphi 0, %s122
    $region4: #{tpu_custom_call.1} parent=1 // loop_header_branch
      %17 = sbr.rel (%p15) target = $region8
    $region5: #{tpu_custom_call.1} parent=1 // loop_body
      %s19 = ssub.s32 %s14, 1
      %s20 = ssub.s32 %s14, 2
      %s21 = sadd.s32 %s14, 1
      %s22 = ssub.s32 %s14, %s21
      %p23 = scmp.eq.s32.totalorder %s22, 0
      %s25 = sadd.s32 %s24, 1
      %s26 = scalar_select %p23, %s24, %s25
      %p29 = pneg %p23
      %p30 = scmp.eq.s32.totalorder %s14, 1
      %p31 = por %p29, %p30
      %p32 = scmp.ne.s32.totalorder %s24, %s27
      %p33 = scmp.eq.s32.totalorder %s14, 0
      %p34 = por %p32, %p33
      %p35 = scmp.ne.s32.totalorder %s24, %s27
      %p36 = scmp.eq.s32.totalorder %s19, 1
      %p37 = por %p35, %p36
      %p38 = scmp.ne.s32.totalorder %s27, %s28
      %p39 = scmp.eq.s32.totalorder %s19, 0
      %p40 = por %p38, %p39
      %p41 = scmp.ne.s32.totalorder %s27, %s28
      %p42 = scmp.eq.s32.totalorder %s20, 1
      %p43 = por %p41, %p42
      %p45 = scmp.ne.s32.totalorder %s28, %s44
      %p46 = scmp.eq.s32.totalorder %s20, 0
      %p47 = por %p45, %p46
      %s49 = sadd.s32 %s48, 1
      %p52 = scmp.eq.s32.totalorder %s14, 1
      %p53 = scmp.ne.s32.totalorder %s48, %s50
      %p54 = scmp.eq.s32.totalorder %s14, 0
      %p55 = por %p53, %p54
      %p56 = scmp.ne.s32.totalorder %s48, %s50
      %p57 = scmp.eq.s32.totalorder %s19, 1
      %p58 = por %p56, %p57
      %p59 = scmp.ne.s32.totalorder %s50, %s51
      %p60 = scmp.eq.s32.totalorder %s19, 0
      %p61 = por %p59, %p60
      %p62 = scmp.ne.s32.totalorder %s50, %s51
      %p63 = scmp.eq.s32.totalorder %s20, 1
      %p64 = por %p62, %p63
      %p66 = scmp.ne.s32.totalorder %s51, %s65
      %p67 = scmp.eq.s32.totalorder %s20, 0
      %p68 = por %p66, %p67
      %s70 = sadd.s32 %s69, 1
      %p73 = scmp.eq.s32.totalorder %s14, 1
      %p74 = scmp.ne.s32.totalorder %s69, %s71
      %p75 = scmp.eq.s32.totalorder %s14, 0
      %p76 = por %p74, %p75
      %p77 = scmp.ne.s32.totalorder %s69, %s71
      %p78 = scmp.eq.s32.totalorder %s19, 1
      %p79 = por %p77, %p78
      %p80 = scmp.ne.s32.totalorder %s71, %s72
      %p81 = scmp.eq.s32.totalorder %s19, 0
      %p82 = por %p80, %p81
      %p83 = scmp.ne.s32.totalorder %s71, %s72
      %p84 = scmp.eq.s32.totalorder %s20, 1
      %p85 = por %p83, %p84
      %p87 = scmp.ne.s32.totalorder %s72, %s86
      %p88 = scmp.eq.s32.totalorder %s20, 0
      %p89 = por %p87, %p88
      %s90 = ssub.s32 %s14, %s21
      %p91 = scmp.eq.s32.totalorder %s90, 0
      %s93 = sadd.s32 %s92, 1
      %s94 = scalar_select %p91, %s92, %s93
      %p97 = pneg %p91
      %p98 = scmp.eq.s32.totalorder %s14, 1
      %p99 = por %p97, %p98
      %p100 = scmp.ne.s32.totalorder %s92, %s95
      %p101 = scmp.eq.s32.totalorder %s14, 0
      %p102 = por %p100, %p101
      %p103 = scmp.ne.s32.totalorder %s92, %s95
      %p104 = scmp.eq.s32.totalorder %s19, 1
      %p105 = por %p103, %p104
      %p106 = scmp.ne.s32.totalorder %s95, %s96
      %p107 = scmp.eq.s32.totalorder %s19, 0
      %p108 = por %p106, %p107
      %p109 = scmp.ne.s32.totalorder %s95, %s96
      %p110 = scmp.eq.s32.totalorder %s20, 1
      %p111 = por %p109, %p110
      %p113 = scmp.ne.s32.totalorder %s96, %s112
      %p114 = scmp.eq.s32.totalorder %s20, 0
      %p115 = por %p113, %p114
      %s116 = ssub.s32 %s14, %s21
      %p117 = scmp.eq.s32.totalorder %s116, 0
      %s119 = sadd.s32 %s118, 1
      %s120 = scalar_select %p117, %s118, %s119
      %p123 = pneg %p117
      %p124 = scmp.eq.s32.totalorder %s14, 1
      %p125 = por %p123, %p124
      %p126 = scmp.ne.s32.totalorder %s118, %s121
      %p127 = scmp.eq.s32.totalorder %s14, 0
      %p128 = por %p126, %p127
      %p129 = scmp.ne.s32.totalorder %s118, %s121
      %p130 = scmp.eq.s32.totalorder %s19, 1
      %p131 = por %p129, %p130
      %p132 = scmp.ne.s32.totalorder %s121, %s122
      %p133 = scmp.eq.s32.totalorder %s19, 0
      %p134 = por %p132, %p133
      %p135 = scmp.ne.s32.totalorder %s121, %s122
      %p136 = scmp.eq.s32.totalorder %s20, 1
      %p137 = por %p135, %p136
      %p139 = scmp.ne.s32.totalorder %s122, %s138
      %p140 = scmp.eq.s32.totalorder %s20, 0
      %p141 = por %p139, %p140
      %p142 = scmp.le.s32.totalorder 1, %s14
      %p143 = scmp.lt.s32.totalorder %s14, 3
      %p144 = pnand %p142, %p143
      %p145 = pneg %p144
      // Predicated region
      $region9: #{tpu_custom_call.1} parent=5 // pred_check
        _
      $region10: #{tpu_custom_call.1} parent=5 // pred_check_branch
        %147 = sbr.rel (%p144) target = $region12
      $region11: #{tpu_custom_call.1} parent=5 // pred_region
        %s148 = ssub.s32 %s14, 1
        // Predicated region
        $region13: #{tpu_custom_call.1} parent=11 // pred_check
          %p149 = pneg %p61
        $region14: #{tpu_custom_call.1} parent=11 // pred_check_branch
          %151 = sbr.rel (%p149) target = $region16
        $region15: #{tpu_custom_call.1} parent=11 // pred_region
          _
        $region16: #{tpu_custom_call.1} parent=11 // pred_fallthru
          _
        // Predicated region
        $region17: #{tpu_custom_call.1} parent=11 // pred_check
          %p152 = pneg %p82
        $region18: #{tpu_custom_call.1} parent=11 // pred_check_branch
          %154 = sbr.rel (%p152) target = $region20
        $region19: #{tpu_custom_call.1} parent=11 // pred_region
          _
        $region20: #{tpu_custom_call.1} parent=11 // pred_fallthru
          _
      $region12: #{tpu_custom_call.1} parent=5 // pred_fallthru
        _
      %p155 = scmp.lt.s32.totalorder %s14, 2
      // Predicated region
      $region21: #{tpu_custom_call.1} parent=5 // pred_check
        %p156 = pneg %p155
      $region22: #{tpu_custom_call.1} parent=5 // pred_check_branch
        %158 = sbr.rel (%p156) target = $region24
      $region23: #{tpu_custom_call.1} parent=5 // pred_region
        // Predicated region
        $region25: #{tpu_custom_call.1} parent=23 // pred_check
          %p159 = pneg %p34
        $region26: #{tpu_custom_call.1} parent=23 // pred_check_branch
          %161 = sbr.rel (%p159) target = $region28
        $region27: #{tpu_custom_call.1} parent=23 // pred_region
          %s162 = smul.u32 8, %s14
          %p163 = scmp.lt.s32.totalorder %s162, 15
          %s164 = scalar_select %p163, %s162, 15
          %s165 = smul.addr %s164, 8
          %s166 = scalar_lea.vmem %s0, %s165
          %s167 = smul.u32 8, %s14
        $region28: #{tpu_custom_call.1} parent=23 // pred_fallthru
          _
      $region24: #{tpu_custom_call.1} parent=5 // pred_fallthru
        _
      %p168 = scmp.le.s32.totalorder 1, %s14
      %p169 = scmp.lt.s32.totalorder %s14, 3
      %p170 = pnand %p168, %p169
      %p171 = pneg %p170
      // Predicated region
      $region29: #{tpu_custom_call.1} parent=5 // pred_check
        _
      $region30: #{tpu_custom_call.1} parent=5 // pred_check_branch
        %173 = sbr.rel (%p170) target = $region32
      $region31: #{tpu_custom_call.1} parent=5 // pred_region
        %s174 = ssub.s32 %s14, 1
        %s175 = smul.u32 8, %s19
        %p176 = scmp.lt.s32.totalorder %s175, 15
        %s177 = scalar_select %p176, %s175, 15
        %s178 = smul.addr %s177, 8
        %s179 = scalar_lea.vmem %s0, %s178
        %p180 = pneg %p40
        %p181 = pneg %p37
        %p182 = pneg %p61
        %p183 = pneg %p58
        %p184 = pneg %p82
        %p185 = pneg %p79
        %p186 = pneg %p108
        %p187 = pneg %p105
        %s188 = sand.u32 %s95, 1
        %s189 = scalar_lea.sflag [#allocation3], %s188
        %s190 = sand.u32 %s95, 1
        %s191 = smul.addr %s190, 32
        %s192 = scalar_lea.vmem [#allocation2], %s191
        %p193 = pneg %p134
        %p194 = pneg %p131
        %s195 = smul.u32 8, %s19
        %p196 = scmp.lt.s32.totalorder %s195, 15
        %s197 = scalar_select %p196, %s195, 15
        %s198 = smul.addr %s197, 8
        %s199 = scalar_lea.vmem %s4, %s198
        %s200 = smul.u32 8, %s19
        %p201 = scmp.lt.s32.totalorder %s200, 15
        %s202 = scalar_select %p201, %s200, 15
        %s203 = smul.addr %s202, 8
        %s204 = scalar_lea.vmem %s0, %s203
        %s205 = smul.u32 8, %s19
        %s206 = smul.u32 8, %s19
        %s207 = smul.u32 8, %s19
        %p208 = scmp.lt.s32.totalorder %s207, 15
        %s209 = scalar_select %p208, %s207, 15
        %s210 = smul.addr %s209, 8
        %s211 = scalar_lea.vmem %s4, %s210
        %s212 = smul.u32 8, %s19
        %v213 = vld [vmem:[%s204] sm:$0xff]
        %v214 = vld [vmem:[%s204 + $0x8] sm:$0xff]
        %v215 = vld [vmem:[%s204 + $0x10] sm:$0xff]
        %v216 = vld [vmem:[%s204 + $0x18] sm:$0xff]
        %v217 = vld [vmem:[%s204 + $0x20] sm:$0xff]
        %v218 = vld [vmem:[%s204 + $0x28] sm:$0xff]
        %v219 = vld [vmem:[%s204 + $0x30] sm:$0xff]
        %v220 = vld [vmem:[%s204 + $0x38] sm:$0xff]
        %v221 = vld [vmem:[%s1] sm:$0xff]
        %v222 = vld [vmem:[%s1 + $0x8] sm:$0xff]
        %vm223 = vcmask 130048
        %v225 = vsel %vm223, %v213, 0
        %v228 = vsel %vm223, %v214, 0
        %v231 = vsel %vm223, %v215, 0
        %v234 = vsel %vm223, %v216, 0
        %v237 = vsel %vm223, %v217, 0
        %v240 = vsel %vm223, %v218, 0
        %v243 = vsel %vm223, %v219, 0
        %v246 = vsel %vm223, %v220, 0
        %248 = vmatprep.subr.mxu0 0.0
        %249 = vmatpush1.msra.mxu0 %v221
        %250 = vmatprep.subr.mxu0 0.0
        %251 = vmatpush1.msra.mxu0 %v222
        %252 = vmatprep.subr.mxu0 0.0
        %253 = vmatpush1.msra.mxu0 0.0
        %254 = vmatprep.subr.mxu0 0.0
        %255 = vmatpush1.msra.mxu0 0.0
        %256 = vmatprep.subr.mxu0 0.0
        %257 = vmatpush1.msra.mxu0 0.0
        %258 = vmatprep.subr.mxu0 0.0
        %259 = vmatpush1.msra.mxu0 0.0
        %260 = vmatprep.subr.mxu0 0.0
        %261 = vmatpush1.msra.mxu0 0.0
        %262 = vmatprep.subr.mxu0 0.0
        %263 = vmatpush1.msra.mxu0 0.0
        %264 = vmatprep.subr.mxu0 0.0
        %265 = vmatpush1.msra.mxu0 0.0
        %266 = vmatprep.subr.mxu0 0.0
        %267 = vmatpush1.msra.mxu0 0.0
        %268 = vmatprep.subr.mxu0 0.0
        %269 = vmatpush1.msra.mxu0 0.0
        %270 = vmatprep.subr.mxu0 0.0
        %271 = vmatpush1.msra.mxu0 0.0
        %272 = vmatprep.subr.mxu0 0.0
        %273 = vmatpush1.msra.mxu0 0.0
        %274 = vmatprep.subr.mxu0 0.0
        %275 = vmatpush1.msra.mxu0 0.0
        %276 = vmatprep.subr.mxu0 0.0
        %277 = vmatpush1.msra.mxu0 0.0
        %278 = vmatprep.subr.mxu0 0.0
        %279 = vmatpush1.msra.mxu0 0.0
        %280 = vmatprep.subr.mxu0 0.0
        %281 = vmatpush1.msra.mxu0 0.0
        %282 = vmatprep.subr.mxu0 0.0
        %283 = vmatpush1.msra.mxu0 0.0
        %284 = vmatprep.subr.mxu0 0.0
        %285 = vmatpush1.msra.mxu0 0.0
        %286 = vmatprep.subr.mxu0 0.0
        %287 = vmatpush1.msra.mxu0 0.0
        %288 = vmatprep.subr.mxu0 0.0
        %289 = vmatpush1.msra.mxu0 0.0
        %290 = vmatprep.subr.mxu0 0.0
        %291 = vmatpush1.msra.mxu0 0.0
        %292 = vmatprep.subr.mxu0 0.0
        %293 = vmatpush1.msra.mxu0 0.0
        %294 = vmatprep.subr.mxu0 0.0
        %295 = vmatpush1.msra.mxu0 0.0
        %296 = vmatprep.subr.mxu0 0.0
        %297 = vmatpush1.msra.mxu0 0.0
        %298 = vmatprep.subr.mxu0 0.0
        %299 = vmatpush1.msra.mxu0 0.0
        %300 = vmatprep.subr.mxu0 0.0
        %301 = vmatpush1.msra.mxu0 0.0
        %302 = vmatprep.subr.mxu0 0.0
        %303 = vmatpush1.msra.mxu0 0.0
        %304 = vmatprep.subr.mxu0 0.0
        %305 = vmatpush1.msra.mxu0 0.0
        %306 = vmatprep.subr.mxu0 0.0
        %307 = vmatpush1.msra.mxu0 0.0
        %308 = vmatprep.subr.mxu0 0.0
        %309 = vmatpush1.msra.mxu0 0.0
        %310 = vmatprep.subr.mxu0 0.0
        %311 = vmatpush1.msra.mxu0 0.0
        %312 = vmatprep.mubr.f32.mxu0 0.0
        %313 = vmatmul.mubr.f32.gmra.mrb[0].mxu0 %v225
        %v314 = vpop.f32.mrb[0].mxu0
        %v315 = vadd.f32 0.0, %v314
        %v316 = vpop.f32.mrb[0].mxu0
        %317 = vmatprep.mubr.f32.mxu0 0.0
        %318 = vmatmul.mubr.f32.gmra.mrb[0].mxu0 %v228
        %v319 = vpop.f32.mrb[0].mxu0
        %v320 = vadd.f32 0.0, %v319
        %v321 = vpop.f32.mrb[0].mxu0
        %322 = vmatprep.mubr.f32.mxu0 0.0
        %323 = vmatmul.mubr.f32.gmra.mrb[0].mxu0 %v231
        %v324 = vpop.f32.mrb[0].mxu0
        %v325 = vadd.f32 0.0, %v324
        %v326 = vpop.f32.mrb[0].mxu0
        %327 = vmatprep.mubr.f32.mxu0 0.0
        %328 = vmatmul.mubr.f32.gmra.mrb[0].mxu0 %v234
        %v329 = vpop.f32.mrb[0].mxu0
        %v330 = vadd.f32 0.0, %v329
        %v331 = vpop.f32.mrb[0].mxu0
        %332 = vmatprep.mubr.f32.mxu0 0.0
        %333 = vmatmul.mubr.f32.gmra.mrb[0].mxu0 %v237
        %v334 = vpop.f32.mrb[0].mxu0
        %v335 = vadd.f32 0.0, %v334
        %v336 = vpop.f32.mrb[0].mxu0
        %337 = vmatprep.mubr.f32.mxu0 0.0
        %338 = vmatmul.mubr.f32.gmra.mrb[0].mxu0 %v240
        %v339 = vpop.f32.mrb[0].mxu0
        %v340 = vadd.f32 0.0, %v339
        %v341 = vpop.f32.mrb[0].mxu0
        %342 = vmatprep.mubr.f32.mxu0 0.0
        %343 = vmatmul.mubr.f32.gmra.mrb[0].mxu0 %v243
        %v344 = vpop.f32.mrb[0].mxu0
        %v345 = vadd.f32 0.0, %v344
        %v346 = vpop.f32.mrb[0].mxu0
        %347 = vmatprep.mubr.f32.mxu0 0.0
        %348 = vmatmul.mubr.f32.gmra.mrb[0].mxu0 %v246
        %v349 = vpop.f32.mrb[0].mxu0
        %v350 = vadd.f32 0.0, %v349
        %v351 = vpop.f32.mrb[0].mxu0
        %352 = vdwg.mxu0
        %v353 = vld [vmem:[%s2] sm:$0xff]
        %v354 = vld [vmem:[%s2 + $0x8] sm:$0xff]
        %v355 = vld [vmem:[%s2 + $0x10] sm:$0xff]
        %v356 = vld [vmem:[%s2 + $0x18] sm:$0xff]
        %v357 = vld [vmem:[%s2 + $0x20] sm:$0xff]
        %v358 = vld [vmem:[%s2 + $0x28] sm:$0xff]
        %v359 = vld [vmem:[%s2 + $0x30] sm:$0xff]
        %v360 = vld [vmem:[%s2 + $0x38] sm:$0xff]
        %v361 = vld [vmem:[%s2 + $0x40] sm:$0xff]
        %v362 = vld [vmem:[%s2 + $0x48] sm:$0xff]
        %v363 = vld [vmem:[%s2 + $0x50] sm:$0xff]
        %v364 = vld [vmem:[%s2 + $0x58] sm:$0xff]
        %v365 = vld [vmem:[%s2 + $0x60] sm:$0xff]
        %v366 = vld [vmem:[%s2 + $0x68] sm:$0xff]
        %v367 = vld [vmem:[%s2 + $0x70] sm:$0xff]
        %v368 = vld [vmem:[%s2 + $0x78] sm:$0xff]
        %369 = vmatprep.subr.mxu0 0.0
        %370 = vmatpush1.msra.mxu0 %v353
        %371 = vmatprep.subr.mxu0 0.0
        %372 = vmatpush1.msra.mxu0 %v354
        %373 = vmatprep.subr.mxu0 0.0
        %374 = vmatpush1.msra.mxu0 %v355
        %375 = vmatprep.subr.mxu0 0.0
        %376 = vmatpush1.msra.mxu0 %v356
        %377 = vmatprep.subr.mxu0 0.0
        %378 = vmatpush1.msra.mxu0 %v357
        %379 = vmatprep.subr.mxu0 0.0
        %380 = vmatpush1.msra.mxu0 %v358
        %381 = vmatprep.subr.mxu0 0.0
        %382 = vmatpush1.msra.mxu0 %v359
        %383 = vmatprep.subr.mxu0 0.0
        %384 = vmatpush1.msra.mxu0 %v360
        %385 = vmatprep.subr.mxu0 0.0
        %386 = vmatpush1.msra.mxu0 %v361
        %387 = vmatprep.subr.mxu0 0.0
        %388 = vmatpush1.msra.mxu0 %v362
        %389 = vmatprep.subr.mxu0 0.0
        %390 = vmatpush1.msra.mxu0 %v363
        %391 = vmatprep.subr.mxu0 0.0
        %392 = vmatpush1.msra.mxu0 %v364
        %393 = vmatprep.subr.mxu0 0.0
        %394 = vmatpush1.msra.mxu0 %v365
        %395 = vmatprep.subr.mxu0 0.0
        %396 = vmatpush1.msra.mxu0 %v366
        %397 = vmatprep.subr.mxu0 0.0
        %398 = vmatpush1.msra.mxu0 %v367
        %399 = vmatprep.subr.mxu0 0.0
        %400 = vmatpush1.msra.mxu0 %v368
        %401 = vmatprep.subr.mxu0 0.0
        %402 = vmatpush1.msra.mxu0 0.0
        %403 = vmatprep.subr.mxu0 0.0
        %404 = vmatpush1.msra.mxu0 0.0
        %405 = vmatprep.subr.mxu0 0.0
        %406 = vmatpush1.msra.mxu0 0.0
        %407 = vmatprep.subr.mxu0 0.0
        %408 = vmatpush1.msra.mxu0 0.0
        %409 = vmatprep.subr.mxu0 0.0
        %410 = vmatpush1.msra.mxu0 0.0
        %411 = vmatprep.subr.mxu0 0.0
        %412 = vmatpush1.msra.mxu0 0.0
        %413 = vmatprep.subr.mxu0 0.0
        %414 = vmatpush1.msra.mxu0 0.0
        %415 = vmatprep.subr.mxu0 0.0
        %416 = vmatpush1.msra.mxu0 0.0
        %417 = vmatprep.subr.mxu0 0.0
        %418 = vmatpush1.msra.mxu0 0.0
        %419 = vmatprep.subr.mxu0 0.0
        %420 = vmatpush1.msra.mxu0 0.0
        %421 = vmatprep.subr.mxu0 0.0
        %422 = vmatpush1.msra.mxu0 0.0
        %423 = vmatprep.subr.mxu0 0.0
        %424 = vmatpush1.msra.mxu0 0.0
        %425 = vmatprep.subr.mxu0 0.0
        %426 = vmatpush1.msra.mxu0 0.0
        %427 = vmatprep.subr.mxu0 0.0
        %428 = vmatpush1.msra.mxu0 0.0
        %429 = vmatprep.subr.mxu0 0.0
        %430 = vmatpush1.msra.mxu0 0.0
        %431 = vmatprep.subr.mxu0 0.0
        %432 = vmatpush1.msra.mxu0 0.0
        %433 = vmatprep.mubr.f32.mxu0 0.0
        %434 = vmatmul.mubr.f32.gmra.mrb[0].mxu0 %v315
        %v435 = vpop.f32.mrb[0].mxu0
        %v436 = vadd.f32 0.0, %v435
        %v437 = vpop.f32.mrb[0].mxu0
        %438 = vmatprep.mubr.f32.mxu0 0.0
        %439 = vmatmul.mubr.f32.gmra.mrb[0].mxu0 %v320
        %v440 = vpop.f32.mrb[0].mxu0
        %v441 = vadd.f32 0.0, %v440
        %v442 = vpop.f32.mrb[0].mxu0
        %443 = vmatprep.mubr.f32.mxu0 0.0
        %444 = vmatmul.mubr.f32.gmra.mrb[0].mxu0 %v325
        %v445 = vpop.f32.mrb[0].mxu0
        %v446 = vadd.f32 0.0, %v445
        %v447 = vpop.f32.mrb[0].mxu0
        %448 = vmatprep.mubr.f32.mxu0 0.0
        %449 = vmatmul.mubr.f32.gmra.mrb[0].mxu0 %v330
        %v450 = vpop.f32.mrb[0].mxu0
        %v451 = vadd.f32 0.0, %v450
        %v452 = vpop.f32.mrb[0].mxu0
        %453 = vmatprep.mubr.f32.mxu0 0.0
        %454 = vmatmul.mubr.f32.gmra.mrb[0].mxu0 %v335
        %v455 = vpop.f32.mrb[0].mxu0
        %v456 = vadd.f32 0.0, %v455
        %v457 = vpop.f32.mrb[0].mxu0
        %458 = vmatprep.mubr.f32.mxu0 0.0
        %459 = vmatmul.mubr.f32.gmra.mrb[0].mxu0 %v340
        %v460 = vpop.f32.mrb[0].mxu0
        %v461 = vadd.f32 0.0, %v460
        %v462 = vpop.f32.mrb[0].mxu0
        %463 = vmatprep.mubr.f32.mxu0 0.0
        %464 = vmatmul.mubr.f32.gmra.mrb[0].mxu0 %v345
        %v465 = vpop.f32.mrb[0].mxu0
        %v466 = vadd.f32 0.0, %v465
        %v467 = vpop.f32.mrb[0].mxu0
        %468 = vmatprep.mubr.f32.mxu0 0.0
        %469 = vmatmul.mubr.f32.gmra.mrb[0].mxu0 %v350
        %v470 = vpop.f32.mrb[0].mxu0
        %v471 = vadd.f32 0.0, %v470
        %v472 = vpop.f32.mrb[0].mxu0
        %473 = vdwg.mxu0
        %v474 = vlaneseq
        %v475 = vand.u32 %v474, 127
        %vm476 = vcmp.lt.s32.totalorder %v475, 2
        %v477 = vsel %vm476, 80.0, 16.0
        %v478 = vsub.f32 0.0, %v477
        %v479 = vmax.f32 %v478, %v436
        %v480 = vmax.f32 %v478, %v441
        %v481 = vmax.f32 %v478, %v446
        %v482 = vmax.f32 %v478, %v451
        %v483 = vmax.f32 %v478, %v456
        %v484 = vmax.f32 %v478, %v461
        %v485 = vmax.f32 %v478, %v466
        %v486 = vmax.f32 %v478, %v471
        %v487 = vmin.f32 %v477, %v479
        %v488 = vmin.f32 %v477, %v480
        %v489 = vmin.f32 %v477, %v481
        %v490 = vmin.f32 %v477, %v482
        %v491 = vmin.f32 %v477, %v483
        %v492 = vmin.f32 %v477, %v484
        %v493 = vmin.f32 %v477, %v485
        %v494 = vmin.f32 %v477, %v486
        %v495 = vsub.f32 0.0, %v487
        %v496 = vsub.f32 0.0, %v488
        %v497 = vsub.f32 0.0, %v489
        %v498 = vsub.f32 0.0, %v490
        %v499 = vsub.f32 0.0, %v491
        %v500 = vsub.f32 0.0, %v492
        %v501 = vsub.f32 0.0, %v493
        %v502 = vsub.f32 0.0, %v494
        %v503 = vmul.f32 %v495, 1.442695
        %v504 = vpow.pop %v503
        %v505 = vmul.f32 %v496, 1.442695
        %v506 = vpow.pop %v505
        %v507 = vmul.f32 %v497, 1.442695
        %v508 = vpow.pop %v507
        %v509 = vmul.f32 %v498, 1.442695
        %v510 = vpow.pop %v509
        %v511 = vmul.f32 %v499, 1.442695
        %v512 = vpow.pop %v511
        %v513 = vmul.f32 %v500, 1.442695
        %v514 = vpow.pop %v513
        %v515 = vmul.f32 %v501, 1.442695
        %v516 = vpow.pop %v515
        %v517 = vmul.f32 %v502, 1.442695
        %v518 = vpow.pop %v517
        %vm519 = vcmask 31744
        %520 = vst.msk [vmem:[%s211] sm:$0xff] %vm519, %v504
        %521 = vst.msk [vmem:[%s211 + $0x8] sm:$0xff] %vm519, %v506
        %522 = vst.msk [vmem:[%s211 + $0x10] sm:$0xff] %vm519, %v508
        %523 = vst.msk [vmem:[%s211 + $0x18] sm:$0xff] %vm519, %v510
        %524 = vst.msk [vmem:[%s211 + $0x20] sm:$0xff] %vm519, %v512
        %525 = vst.msk [vmem:[%s211 + $0x28] sm:$0xff] %vm519, %v514
        %526 = vst.msk [vmem:[%s211 + $0x30] sm:$0xff] %vm519, %v516
        %527 = vst.msk [vmem:[%s211 + $0x38] sm:$0xff] %vm519, %v518
        %v528 = vpack.c.bf16 %v320, %v315
        %v529 = vpack.c.bf16 %v330, %v325
        %v530 = vpack.c.bf16 %v340, %v335
        %v531 = vpack.c.bf16 %v350, %v345
        %v536 = vunpack.c.l.b16 %v528
        %v537 = vunpack.c.h.b16 %v528
        %v538 = vunpack.c.l.b16 %v529
        %v539 = vunpack.c.h.b16 %v529
        %v540 = vunpack.c.l.b16 %v530
        %v541 = vunpack.c.h.b16 %v530
        %v542 = vunpack.c.l.b16 %v531
        %v543 = vunpack.c.h.b16 %v531
        %v544 = vpack.c.b16 %v536, %v536
        %v545 = vpack.c.b16 %v537, %v537
        %v546 = vpack.c.b16 %v538, %v538
        %v547 = vpack.c.b16 %v539, %v539
        %v548 = vpack.c.b16 %v540, %v540
        %v549 = vpack.c.b16 %v541, %v541
        %v550 = vpack.c.b16 %v542, %v542
        %v551 = vpack.c.b16 %v543, %v543
        %560 = vst [vmem:[%s192] sm:$0xf] %v544
        %561 = vst [vmem:[%s192 + $0x4] sm:$0xf] %v545
        %562 = vst [vmem:[%s192 + $0x8] sm:$0xf] %v546
        %563 = vst [vmem:[%s192 + $0xc] sm:$0xf] %v547
        %564 = vst [vmem:[%s192 + $0x10] sm:$0xf] %v548
        %565 = vst [vmem:[%s192 + $0x14] sm:$0xf] %v549
        %566 = vst [vmem:[%s192 + $0x18] sm:$0xf] %v550
        %567 = vst [vmem:[%s192 + $0x1c] sm:$0xf] %v551
        %s568 = sand.u32 %s95, 1
        %s569 = scalar_lea.sflag [#allocation3], %s568
        %s570 = sand.u32 %s95, 1
        %s571 = smul.addr %s570, 32
        %s572 = scalar_lea.vmem [#allocation2], %s571
        %s573 = smul.u32 8, %s19
        %p574 = scmp.lt.s32.totalorder %s573, 15
        %s575 = scalar_select %p574, %s573, 15
        %s576 = smul.addr %s575, 8
        %s577 = scalar_lea.vmem %s4, %s576
        // Predicated region
        $region33: #{tpu_custom_call.1} parent=31 // pred_check
          %p578 = pneg %p105
        $region34: #{tpu_custom_call.1} parent=31 // pred_check_branch
          %580 = sbr.rel (%p578) target = $region36
        $region35: #{tpu_custom_call.1} parent=31 // pred_region
          %s581 = smul.u32 8, %s19
          %s583 = ssub.s32 512, 512
          %584 = vsyncadd %s569, %s583
          %s585 = smul.addr %s581, 64
          %s586 = scalar_lea.hbm %s3, %s585
          %s587 = sshll.u32 %s572, 4
          %s588 = int_to_ptr.vmem [resolvable:$true] %s587
          %593 = dma.vmem_to_hbm [thread:$0]  %s588, 512, %s586, %s569, 64, 64, 4
        $region36: #{tpu_custom_call.1} parent=31 // pred_fallthru
          _
        // Predicated region
        $region37: #{tpu_custom_call.1} parent=31 // pred_check
          %p594 = pneg %p131
        $region38: #{tpu_custom_call.1} parent=31 // pred_check_branch
          %596 = sbr.rel (%p594) target = $region40
        $region39: #{tpu_custom_call.1} parent=31 // pred_region
          %s597 = smul.u32 8, %s19
        $region40: #{tpu_custom_call.1} parent=31 // pred_fallthru
          _
      $region32: #{tpu_custom_call.1} parent=5 // pred_fallthru
        _
      %p598 = scmp.le.s32.totalorder 2, %s14
      // Predicated region
      $region41: #{tpu_custom_call.1} parent=5 // pred_check
        %p599 = pneg %p598
      $region42: #{tpu_custom_call.1} parent=5 // pred_check_branch
        %601 = sbr.rel (%p599) target = $region44
      $region43: #{tpu_custom_call.1} parent=5 // pred_region
        %s602 = ssub.s32 %s14, 2
        // Predicated region
        $region45: #{tpu_custom_call.1} parent=43 // pred_check
          %p603 = pneg %p111
        $region46: #{tpu_custom_call.1} parent=43 // pred_check_branch
          %605 = sbr.rel (%p603) target = $region48
        $region47: #{tpu_custom_call.1} parent=43 // pred_region
          %s606 = sand.u32 %s96, 1
          %s607 = scalar_lea.sflag [#allocation3], %s606
          %s608 = sand.u32 %s96, 1
          %s609 = smul.addr %s608, 32
          %s610 = scalar_lea.vmem [#allocation2], %s609
          %611 = dma.done %s607, 512
        $region48: #{tpu_custom_call.1} parent=43 // pred_fallthru
          _
        // Predicated region
        $region49: #{tpu_custom_call.1} parent=43 // pred_check
          %p612 = pneg %p137
        $region50: #{tpu_custom_call.1} parent=43 // pred_check_branch
          %614 = sbr.rel (%p612) target = $region52
        $region51: #{tpu_custom_call.1} parent=43 // pred_region
          %s615 = smul.u32 8, %s20
          %p616 = scmp.lt.s32.totalorder %s615, 15
          %s617 = scalar_select %p616, %s615, 15
          %s618 = smul.addr %s617, 8
          %s619 = scalar_lea.vmem %s4, %s618
        $region52: #{tpu_custom_call.1} parent=43 // pred_fallthru
          _
      $region44: #{tpu_custom_call.1} parent=5 // pred_fallthru
        _
    $region6: #{tpu_custom_call.1} parent=1 // loop_footer
      %s18 = sadd.s32 1, %s14
    $region7: #{tpu_custom_call.1} parent=1 // loop_footer_branch
      %13 = sbr.rel target = $region3
    $region8: #{tpu_custom_call.1} parent=1 // loop_exit
      _
    %620 = vsyncpa [#allocation3], 1
    %s621 = scalar_lea.sflag [#allocation3], 1
    %622 = vsyncpa %s621, 1

</llo_original>
